<compile_context>
chip_gen: v5e
topology: v5e:2x2
jax: 0.10.0
libtpu: 0.0.40
codegen_flags: <defaults>
</compile_context>

<pallas_src>
import functools

import jax
import jax.numpy as jnp
from jax import lax
from jax.experimental import pallas as pl
from jax.experimental.pallas import tpu as pltpu


# 3x3 neighbor offsets (u, v), excluding the center (1, 1); ordering matches the
# PyTorch pre_kernel (flat positions [0, 1, 2, 3, 5, 6, 7, 8]).
_NEIGHBOR_OFFSETS = ((0, 0), (0, 1), (0, 2), (1, 0), (1, 2), (2, 0), (2, 1), (2, 2))


def _lbp_conv_kernel(x_ref, w_ref, cb_ref, vm_ref, o_ref, s_ref, *, C, W, N, d):
    """One (batch, row-strip) tile per grid step.

    x_ref:  (C, Ms)    f32  flat strip (rows padded by d, flat-padded by d, halo
                            included); Ms = (Hs+2d)*W + 2d, spatial axis on lanes.
    w_ref:  (out, 8C)  bf16 sign(weights), column index = k*C + c (neighbor-major).
    cb_ref: (1, N)     f32  checkerboard tie-break (+-1e-8), N = Hs*W.
    vm_ref: (2, N)     f32  column-validity masks (0/1) for v = 0 and v = 2.
    o_ref:  (out, N)   f32  output tile (lane-dense spatial).
    s_ref:  (8C, N)    f32  VMEM scratch holding all 8 sign tiles for the fused dot.
    """
    c0 = d * (W + 1)
    center = x_ref[:, c0:c0 + N]                              # (C, N)

    # Hoisted loop invariants (review): checkerboard - center, and the
    # (1,N)->(C,N) mask broadcasts (JAX does not CSE broadcast_in_dim in a loop).
    cmc = cb_ref[...] - center                                # (C, N)
    vm0 = jnp.broadcast_to(vm_ref[0:1, :], center.shape)      # (C, N)
    vm2 = jnp.broadcast_to(vm_ref[1:2, :], center.shape)      # (C, N)

    for k, (u, v) in enumerate(_NEIGHBOR_OFFSETS):
        start = d * (u * W + v)
        nbr = x_ref[:, start:start + N]                       # (C, N)
        if v == 0:          # left neighbor wraps across rows -> zero (F.conv2d pad)
            nbr = nbr * vm0
        elif v == 2:        # right neighbor wraps -> zero; v == 1 needs no mask
            nbr = nbr * vm2
        t = nbr + cmc                                         # diff + tie-break (!= 0)
        # Sign forward value with a single compare+select instead of jnp.sign.
        s_ref[k * C:(k + 1) * C, :] = jnp.where(t > 0, 1.0, -1.0)

    # One fused K = 8*C MXU matmul (bf16 +-1 operands are exact; f32 accumulation).
    o_ref[...] = lax.dot_general(
        w_ref[...], s_ref[...].astype(jnp.bfloat16),
        dimension_numbers=(((1,), (0,)), ((), ())),
        preferred_element_type=jnp.float32)


def lbp_conv(x, weights, *, stride=1, dilation=1, groups=1, strip_rows=None):
    """LBPConv forward value.

    x:       (B, C, H, W) float32   (NCHW, like the PyTorch module)
    weights: (out_chn, 8*C//groups, 1, 1) float32
    strip_rows: rows per spatial strip (must divide H); None = whole image.
    returns  (B, out_chn, H, W) float32
    """
    # TODO(synk): stride > 1 and groups > 1 of the second (1x1) conv not implemented.
    assert stride == 1, "only stride=1 implemented"
    assert groups == 1, "only groups=1 implemented"
    B, C, H, W = x.shape
    out_chn = weights.shape[0]
    assert weights.shape[1] == 8 * C // groups
    d = int(dilation)

    Hs = H if strip_rows is None else int(strip_rows)
    assert H % Hs == 0, "strip_rows must divide H"
    S = H // Hs
    if S > 1:
        # even strips keep the checkerboard strip-invariant; lane-dense output
        # blocks need the per-strip width to be a multiple of 128 lanes.
        assert Hs % 2 == 0 and (Hs * W) % 128 == 0

    N = Hs * W                          # output pixels per strip
    Ms = (Hs + 2 * d) * W + 2 * d       # flat input length per strip (incl. halo)

    # ---- x-independent prep, hoisted out of the kernel ----------------------
    # binary_weights forward value == sign(weights); reorder columns to k*C + c
    # (matching the scratch row layout) and cast to bf16 (+-1 exact).
    w = jnp.sign(weights.reshape(out_chn, C, 8))                       # [o, c, k]
    w2 = jnp.transpose(w, (0, 2, 1)).reshape(out_chn, 8 * C).astype(jnp.bfloat16)

    # Checkerboard tie-break, lane-dense (1, N); strip-invariant (Hs even or S==1).
    n = jnp.arange(N)
    row_par = (n // W) % 2
    col_par = (n % W) % 2
    cb = jnp.where(row_par == col_par, 1e-8, -1e-8).astype(jnp.float32)[None, :]

    # Column-validity masks, lane-dense (2, N), for the v = 0 / v = 2 neighbors.
    col = n % W
    vm = jnp.stack([col >= d, col < W - d]).astype(jnp.float32)

    # Keep NCHW (channel-major): pad rows by d, flatten spatial, pad the flat axis
    # by d, then cut row strips with a 2*d-row halo.  No transposes anywhere.
    xp = jnp.pad(x, ((0, 0), (0, 0), (d, d), (0, 0)))                  # (B,C,H+2d,W)
    xf = jnp.pad(xp.reshape(B, C, (H + 2 * d) * W), ((0, 0), (0, 0), (d, d)))
    xs = jnp.stack([xf[:, :, s * N: s * N + Ms] for s in range(S)], axis=1)  # (B,S,C,Ms)

    kernel = functools.partial(_lbp_conv_kernel, C=C, W=W, N=N, d=d)

    cost = pl.CostEstimate(
        flops=2 * B * H * W * (8 * C) * out_chn + 3 * B * H * W * 8 * C,
        bytes_accessed=4 * (B * S * C * Ms + B * out_chn * H * W + 3 * N)
                       + 2 * out_chn * 8 * C,
        transcendentals=0)

    y = pl.pallas_call(
        kernel,
        out_shape=jax.ShapeDtypeStruct((B, out_chn, S * N), jnp.float32),
        grid_spec=pltpu.PrefetchScalarGridSpec(
            num_scalar_prefetch=0,
            grid=(B, S),
            in_specs=[
                pl.BlockSpec((None, None, C, Ms), lambda b, s: (b, s, 0, 0)),
                pl.BlockSpec((out_chn, 8 * C), lambda b, s: (0, 0)),
                pl.BlockSpec((1, N), lambda b, s: (0, 0)),
                pl.BlockSpec((2, N), lambda b, s: (0, 0)),
            ],
            out_specs=pl.BlockSpec((None, out_chn, N), lambda b, s: (b, 0, s)),
            scratch_shapes=[pltpu.VMEM((8 * C, N), jnp.float32)],
        ),
        compiler_params=pltpu.CompilerParams(
            dimension_semantics=("parallel", "parallel"),
            vmem_limit_bytes=32 * 1024 * 1024),
        cost_estimate=cost,
    )(xs, w2, cb, vm)

    # (B, out_chn, S*Hs*W) is already NCHW order -> free reshape, no transpose.
    return y.reshape(B, out_chn, H, W)


def lbp_conv_ref(x, weights, *, stride=1, dilation=1, groups=1):
    """Pure-JAX reference mirroring the PyTorch forward (eval mode)."""
    assert stride == 1 and groups == 1
    B, C, H, W = x.shape
    d = int(dilation)
    xp = jnp.pad(x, ((0, 0), (0, 0), (d, d), (d, d)))
    center = xp[:, :, d:d + H, d:d + W]
    diffs = [xp[:, :, u * d:u * d + H, v * d:v * d + W] - center
             for (u, v) in _NEIGHBOR_OFFSETS]
    t = jnp.stack(diffs, axis=2).reshape(B, 8 * C, H, W)      # channel = c*8 + k
    ii = jnp.arange(H)[:, None]
    jj = jnp.arange(W)[None, :]
    mask = (1e-8 * jnp.where(ii % 2 == 0, -1.0, 1.0)
                  * jnp.where(jj % 2 == 0, -1.0, 1.0))
    s = jnp.sign(t + mask)                                    # (B, 8C, H, W)
    wb = jnp.sign(weights[:, :, 0, 0])                        # (out, 8C)
    return jnp.einsum('ok,bkhw->bohw', wb, s)


if __name__ == "__main__":
    key = jax.random.PRNGKey(0)
    kx, kw = jax.random.split(key)

    batch, in_chn, out_chn, H, W = 2, 4, 8, 16, 16

    x = jax.random.normal(kx, (batch, in_chn, H, W), dtype=jnp.float32)
    # nn.Parameter(out_chn, 8*in_chn, 1, 1); only its sign matters for the forward.
    weights = 0.25 * jax.random.normal(
        kw, (out_chn, 8 * in_chn, 1, 1), dtype=jnp.float32)

    y_ref = lbp_conv_ref(x, weights)

    # 1) whole image per grid step (single strip), dilation 1
    y = jax.block_until_ready(lbp_conv(x, weights))
    assert y.shape == (batch, out_chn, H, W)
    assert jnp.allclose(y, y_ref, atol=1e-5, rtol=1e-5), "mismatch (default)"

    # 2) exercise the spatial-strip grid axis (2 row strips with a 2*d-row halo)
    y2 = jax.block_until_ready(lbp_conv(x, weights, strip_rows=8))
    assert jnp.allclose(y2, y_ref, atol=1e-5, rtol=1e-5), "mismatch (strips)"

    # 3) dilation = 2 path
    y3 = jax.block_until_ready(lbp_conv(x, weights, dilation=2))
    y3_ref = lbp_conv_ref(x, weights, dilation=2)
    assert jnp.allclose(y3, y3_ref, atol=1e-5, rtol=1e-5), "mismatch (dilation=2)"

    print("KERNEL_OK")
</pallas_src>

<mosaic_0001>
module attributes {stable_mosaic.version = 11 : i64} {
  func.func @_lbp_conv_kernel(%arg0: i32, %arg1: i32, %arg2: memref<1x1x4x290xf32, #tpu.memory_space<vmem>>, %arg3: memref<8x32xbf16, #tpu.memory_space<vmem>>, %arg4: memref<1x256xf32, #tpu.memory_space<vmem>>, %arg5: memref<2x256xf32, #tpu.memory_space<vmem>>, %arg6: memref<1x8x256xf32, #tpu.memory_space<vmem>>, %arg7: memref<32x256xf32, #tpu.memory_space<vmem>>) attributes {dimension_semantics = [#tpu.dimension_semantics<parallel>, #tpu.dimension_semantics<parallel>], iteration_bounds = array<i64: 2, 1>, scalar_prefetch = 0 : i64, scratch_operands = 1 : i64, tpu.core_type = #tpu.core_type<tc>, window_params = [{transform_indices = @transform_0, window_bounds = array<i64: 1, 1, 4, 290>}, {pipeline_mode = #tpu.pipeline_mode<synchronous>, transform_indices = @transform_1, window_bounds = array<i64: 8, 32>}, {pipeline_mode = #tpu.pipeline_mode<synchronous>, transform_indices = @transform_2, window_bounds = array<i64: 1, 256>}, {pipeline_mode = #tpu.pipeline_mode<synchronous>, transform_indices = @transform_3, window_bounds = array<i64: 2, 256>}, {transform_indices = @transform_4, window_bounds = array<i64: 1, 8, 256>}]} {
    %c0 = arith.constant 0 : index
    %c0_0 = arith.constant 0 : index
    %c0_1 = arith.constant 0 : index
    %c17 = arith.constant 17 : index
    %0 = vector.load %arg2[%c0, %c0_0, %c0_1, %c17] : memref<1x1x4x290xf32, #tpu.memory_space<vmem>>, vector<1x1x4x256xf32>
    %1 = vector.shape_cast %0 : vector<1x1x4x256xf32> to vector<4x256xf32>
    %c0_2 = arith.constant 0 : index
    %c0_3 = arith.constant 0 : index
    %2 = vector.load %arg4[%c0_2, %c0_3] : memref<1x256xf32, #tpu.memory_space<vmem>>, vector<1x256xf32>
    %3 = vector.broadcast %2 : vector<1x256xf32> to vector<4x256xf32>
    %4 = arith.subf %3, %1 : vector<4x256xf32>
    %c0_4 = arith.constant 0 : index
    %c0_5 = arith.constant 0 : index
    %5 = vector.load %arg5[%c0_4, %c0_5] : memref<2x256xf32, #tpu.memory_space<vmem>>, vector<1x256xf32>
    %6 = vector.shape_cast %5 : vector<1x256xf32> to vector<1x256xf32>
    %7 = vector.broadcast %6 : vector<1x256xf32> to vector<4x256xf32>
    %c1 = arith.constant 1 : index
    %c0_6 = arith.constant 0 : index
    %8 = vector.load %arg5[%c1, %c0_6] : memref<2x256xf32, #tpu.memory_space<vmem>>, vector<1x256xf32>
    %9 = vector.shape_cast %8 : vector<1x256xf32> to vector<1x256xf32>
    %10 = vector.broadcast %9 : vector<1x256xf32> to vector<4x256xf32>
    %c0_7 = arith.constant 0 : index
    %c0_8 = arith.constant 0 : index
    %c0_9 = arith.constant 0 : index
    %c0_10 = arith.constant 0 : index
    %11 = vector.load %arg2[%c0_7, %c0_8, %c0_9, %c0_10] : memref<1x1x4x290xf32, #tpu.memory_space<vmem>>, vector<1x1x4x256xf32>
    %12 = vector.shape_cast %11 : vector<1x1x4x256xf32> to vector<4x256xf32>
    %13 = arith.mulf %12, %7 : vector<4x256xf32>
    %14 = arith.addf %13, %4 : vector<4x256xf32>
    %cst = arith.constant 0.000000e+00 : f32
    %15 = vector.broadcast %cst : f32 to vector<4x256xf32>
    %16 = arith.cmpf ogt, %14, %15 : vector<4x256xf32>
    %cst_11 = arith.constant 1.000000e+00 : f32
    %cst_12 = arith.constant -1.000000e+00 : f32
    %17 = vector.broadcast %cst_11 : f32 to vector<4x256xf32>
    %18 = vector.broadcast %cst_12 : f32 to vector<4x256xf32>
    %19 = arith.select %16, %17, %18 : vector<4x256xi1>, vector<4x256xf32>
    %c0_13 = arith.constant 0 : index
    %c0_14 = arith.constant 0 : index
    %20 = vector.load %arg7[%c0_13, %c0_14] : memref<32x256xf32, #tpu.memory_space<vmem>>, vector<4x256xf32>
    tpu.vector_store %arg7[%c0_13, %c0_14], %19 {strides = array<i32>} : memref<32x256xf32, #tpu.memory_space<vmem>>, vector<4x256xf32>,
    %c0_15 = arith.constant 0 : index
    %c0_16 = arith.constant 0 : index
    %c0_17 = arith.constant 0 : index
    %c1_18 = arith.constant 1 : index
    %21 = vector.load %arg2[%c0_15, %c0_16, %c0_17, %c1_18] : memref<1x1x4x290xf32, #tpu.memory_space<vmem>>, vector<1x1x4x256xf32>
    %22 = vector.shape_cast %21 : vector<1x1x4x256xf32> to vector<4x256xf32>
    %23 = arith.addf %22, %4 : vector<4x256xf32>
    %cst_19 = arith.constant 0.000000e+00 : f32
    %24 = vector.broadcast %cst_19 : f32 to vector<4x256xf32>
    %25 = arith.cmpf ogt, %23, %24 : vector<4x256xf32>
    %cst_20 = arith.constant 1.000000e+00 : f32
    %cst_21 = arith.constant -1.000000e+00 : f32
    %26 = vector.broadcast %cst_20 : f32 to vector<4x256xf32>
    %27 = vector.broadcast %cst_21 : f32 to vector<4x256xf32>
    %28 = arith.select %25, %26, %27 : vector<4x256xi1>, vector<4x256xf32>
    %c4 = arith.constant 4 : index
    %c0_22 = arith.constant 0 : index
    %29 = vector.load %arg7[%c4, %c0_22] : memref<32x256xf32, #tpu.memory_space<vmem>>, vector<4x256xf32>
    tpu.vector_store %arg7[%c4, %c0_22], %28 {strides = array<i32>} : memref<32x256xf32, #tpu.memory_space<vmem>>, vector<4x256xf32>,
    %c0_23 = arith.constant 0 : index
    %c0_24 = arith.constant 0 : index
    %c0_25 = arith.constant 0 : index
    %c2 = arith.constant 2 : index
    %30 = vector.load %arg2[%c0_23, %c0_24, %c0_25, %c2] : memref<1x1x4x290xf32, #tpu.memory_space<vmem>>, vector<1x1x4x256xf32>
    %31 = vector.shape_cast %30 : vector<1x1x4x256xf32> to vector<4x256xf32>
    %32 = arith.mulf %31, %10 : vector<4x256xf32>
    %33 = arith.addf %32, %4 : vector<4x256xf32>
    %cst_26 = arith.constant 0.000000e+00 : f32
    %34 = vector.broadcast %cst_26 : f32 to vector<4x256xf32>
    %35 = arith.cmpf ogt, %33, %34 : vector<4x256xf32>
    %cst_27 = arith.constant 1.000000e+00 : f32
    %cst_28 = arith.constant -1.000000e+00 : f32
    %36 = vector.broadcast %cst_27 : f32 to vector<4x256xf32>
    %37 = vector.broadcast %cst_28 : f32 to vector<4x256xf32>
    %38 = arith.select %35, %36, %37 : vector<4x256xi1>, vector<4x256xf32>
    %c8 = arith.constant 8 : index
    %c0_29 = arith.constant 0 : index
    %39 = vector.load %arg7[%c8, %c0_29] : memref<32x256xf32, #tpu.memory_space<vmem>>, vector<4x256xf32>
    tpu.vector_store %arg7[%c8, %c0_29], %38 {strides = array<i32>} : memref<32x256xf32, #tpu.memory_space<vmem>>, vector<4x256xf32>,
    %c0_30 = arith.constant 0 : index
    %c0_31 = arith.constant 0 : index
    %c0_32 = arith.constant 0 : index
    %c16 = arith.constant 16 : index
    %40 = vector.load %arg2[%c0_30, %c0_31, %c0_32, %c16] : memref<1x1x4x290xf32, #tpu.memory_space<vmem>>, vector<1x1x4x256xf32>
    %41 = vector.shape_cast %40 : vector<1x1x4x256xf32> to vector<4x256xf32>
    %42 = arith.mulf %41, %7 : vector<4x256xf32>
    %43 = arith.addf %42, %4 : vector<4x256xf32>
    %cst_33 = arith.constant 0.000000e+00 : f32
    %44 = vector.broadcast %cst_33 : f32 to vector<4x256xf32>
    %45 = arith.cmpf ogt, %43, %44 : vector<4x256xf32>
    %cst_34 = arith.constant 1.000000e+00 : f32
    %cst_35 = arith.constant -1.000000e+00 : f32
    %46 = vector.broadcast %cst_34 : f32 to vector<4x256xf32>
    %47 = vector.broadcast %cst_35 : f32 to vector<4x256xf32>
    %48 = arith.select %45, %46, %47 : vector<4x256xi1>, vector<4x256xf32>
    %c12 = arith.constant 12 : index
    %c0_36 = arith.constant 0 : index
    %49 = vector.load %arg7[%c12, %c0_36] : memref<32x256xf32, #tpu.memory_space<vmem>>, vector<4x256xf32>
    tpu.vector_store %arg7[%c12, %c0_36], %48 {strides = array<i32>} : memref<32x256xf32, #tpu.memory_space<vmem>>, vector<4x256xf32>,
    %c0_37 = arith.constant 0 : index
    %c0_38 = arith.constant 0 : index
    %c0_39 = arith.constant 0 : index
    %c18 = arith.constant 18 : index
    %50 = vector.load %arg2[%c0_37, %c0_38, %c0_39, %c18] : memref<1x1x4x290xf32, #tpu.memory_space<vmem>>, vector<1x1x4x256xf32>
    %51 = vector.shape_cast %50 : vector<1x1x4x256xf32> to vector<4x256xf32>
    %52 = arith.mulf %51, %10 : vector<4x256xf32>
    %53 = arith.addf %52, %4 : vector<4x256xf32>
    %cst_40 = arith.constant 0.000000e+00 : f32
    %54 = vector.broadcast %cst_40 : f32 to vector<4x256xf32>
    %55 = arith.cmpf ogt, %53, %54 : vector<4x256xf32>
    %cst_41 = arith.constant 1.000000e+00 : f32
    %cst_42 = arith.constant -1.000000e+00 : f32
    %56 = vector.broadcast %cst_41 : f32 to vector<4x256xf32>
    %57 = vector.broadcast %cst_42 : f32 to vector<4x256xf32>
    %58 = arith.select %55, %56, %57 : vector<4x256xi1>, vector<4x256xf32>
    %c16_43 = arith.constant 16 : index
    %c0_44 = arith.constant 0 : index
    %59 = vector.load %arg7[%c16_43, %c0_44] : memref<32x256xf32, #tpu.memory_space<vmem>>, vector<4x256xf32>
    tpu.vector_store %arg7[%c16_43, %c0_44], %58 {strides = array<i32>} : memref<32x256xf32, #tpu.memory_space<vmem>>, vector<4x256xf32>,
    %c0_45 = arith.constant 0 : index
    %c0_46 = arith.constant 0 : index
    %c0_47 = arith.constant 0 : index
    %c32 = arith.constant 32 : index
    %60 = vector.load %arg2[%c0_45, %c0_46, %c0_47, %c32] : memref<1x1x4x290xf32, #tpu.memory_space<vmem>>, vector<1x1x4x256xf32>
    %61 = vector.shape_cast %60 : vector<1x1x4x256xf32> to vector<4x256xf32>
    %62 = arith.mulf %61, %7 : vector<4x256xf32>
    %63 = arith.addf %62, %4 : vector<4x256xf32>
    %cst_48 = arith.constant 0.000000e+00 : f32
    %64 = vector.broadcast %cst_48 : f32 to vector<4x256xf32>
    %65 = arith.cmpf ogt, %63, %64 : vector<4x256xf32>
    %cst_49 = arith.constant 1.000000e+00 : f32
    %cst_50 = arith.constant -1.000000e+00 : f32
    %66 = vector.broadcast %cst_49 : f32 to vector<4x256xf32>
    %67 = vector.broadcast %cst_50 : f32 to vector<4x256xf32>
    %68 = arith.select %65, %66, %67 : vector<4x256xi1>, vector<4x256xf32>
    %c20 = arith.constant 20 : index
    %c0_51 = arith.constant 0 : index
    %69 = vector.load %arg7[%c20, %c0_51] : memref<32x256xf32, #tpu.memory_space<vmem>>, vector<4x256xf32>
    tpu.vector_store %arg7[%c20, %c0_51], %68 {strides = array<i32>} : memref<32x256xf32, #tpu.memory_space<vmem>>, vector<4x256xf32>,
    %c0_52 = arith.constant 0 : index
    %c0_53 = arith.constant 0 : index
    %c0_54 = arith.constant 0 : index
    %c33 = arith.constant 33 : index
    %70 = vector.load %arg2[%c0_52, %c0_53, %c0_54, %c33] : memref<1x1x4x290xf32, #tpu.memory_space<vmem>>, vector<1x1x4x256xf32>
    %71 = vector.shape_cast %70 : vector<1x1x4x256xf32> to vector<4x256xf32>
    %72 = arith.addf %71, %4 : vector<4x256xf32>
    %cst_55 = arith.constant 0.000000e+00 : f32
    %73 = vector.broadcast %cst_55 : f32 to vector<4x256xf32>
    %74 = arith.cmpf ogt, %72, %73 : vector<4x256xf32>
    %cst_56 = arith.constant 1.000000e+00 : f32
    %cst_57 = arith.constant -1.000000e+00 : f32
    %75 = vector.broadcast %cst_56 : f32 to vector<4x256xf32>
    %76 = vector.broadcast %cst_57 : f32 to vector<4x256xf32>
    %77 = arith.select %74, %75, %76 : vector<4x256xi1>, vector<4x256xf32>
    %c24 = arith.constant 24 : index
    %c0_58 = arith.constant 0 : index
    %78 = vector.load %arg7[%c24, %c0_58] : memref<32x256xf32, #tpu.memory_space<vmem>>, vector<4x256xf32>
    tpu.vector_store %arg7[%c24, %c0_58], %77 {strides = array<i32>} : memref<32x256xf32, #tpu.memory_space<vmem>>, vector<4x256xf32>,
    %c0_59 = arith.constant 0 : index
    %c0_60 = arith.constant 0 : index
    %c0_61 = arith.constant 0 : index
    %c34 = arith.constant 34 : index
    %79 = vector.load %arg2[%c0_59, %c0_60, %c0_61, %c34] : memref<1x1x4x290xf32, #tpu.memory_space<vmem>>, vector<1x1x4x256xf32>
    %80 = vector.shape_cast %79 : vector<1x1x4x256xf32> to vector<4x256xf32>
    %81 = arith.mulf %80, %10 : vector<4x256xf32>
    %82 = arith.addf %81, %4 : vector<4x256xf32>
    %cst_62 = arith.constant 0.000000e+00 : f32
    %83 = vector.broadcast %cst_62 : f32 to vector<4x256xf32>
    %84 = arith.cmpf ogt, %82, %83 : vector<4x256xf32>
    %cst_63 = arith.constant 1.000000e+00 : f32
    %cst_64 = arith.constant -1.000000e+00 : f32
    %85 = vector.broadcast %cst_63 : f32 to vector<4x256xf32>
    %86 = vector.broadcast %cst_64 : f32 to vector<4x256xf32>
    %87 = arith.select %84, %85, %86 : vector<4x256xi1>, vector<4x256xf32>
    %c28 = arith.constant 28 : index
    %c0_65 = arith.constant 0 : index
    %88 = vector.load %arg7[%c28, %c0_65] : memref<32x256xf32, #tpu.memory_space<vmem>>, vector<4x256xf32>
    tpu.vector_store %arg7[%c28, %c0_65], %87 {strides = array<i32>} : memref<32x256xf32, #tpu.memory_space<vmem>>, vector<4x256xf32>,
    %c0_66 = arith.constant 0 : index
    %c0_67 = arith.constant 0 : index
    %89 = vector.load %arg3[%c0_66, %c0_67] : memref<8x32xbf16, #tpu.memory_space<vmem>>, vector<8x32xbf16>
    %c0_68 = arith.constant 0 : index
    %c0_69 = arith.constant 0 : index
    %90 = vector.load %arg7[%c0_68, %c0_69] : memref<32x256xf32, #tpu.memory_space<vmem>>, vector<32x256xf32>
    %91 = arith.truncf %90 : vector<32x256xf32> to vector<32x256xbf16>
    %cst_70 = arith.constant dense<0.000000e+00> : vector<8x256xf32>
    %92 = tpu.matmul %89, %91, %cst_70 {dimension_numbers = #tpu.dot_dimension_numbers<[1], [0], [0], [1], [0, 0, 1, 1], [], []>} : vector<8x32xbf16>, vector<32x256xbf16>, vector<8x256xf32> -> vector<8x256xf32>
    %c0_71 = arith.constant 0 : index
    %c0_72 = arith.constant 0 : index
    %c0_73 = arith.constant 0 : index
    %93 = vector.load %arg6[%c0_71, %c0_72, %c0_73] : memref<1x8x256xf32, #tpu.memory_space<vmem>>, vector<1x8x256xf32>
    %94 = vector.shape_cast %93 : vector<1x8x256xf32> to vector<8x256xf32>
    %95 = vector.shape_cast %92 : vector<8x256xf32> to vector<1x8x256xf32>
    tpu.vector_store %arg6[%c0_71, %c0_72, %c0_73], %95 {strides = array<i32>} : memref<1x8x256xf32, #tpu.memory_space<vmem>>, vector<1x8x256xf32>,
    return
  }
  func.func @transform_0(%arg0: i32, %arg1: i32) -> (i32, i32, i32, i32) {
    %c0_i32 = arith.constant 0 : i32
    %c0_i32_0 = arith.constant 0 : i32
    %c0_i32_1 = arith.constant 0 : i32
    return %arg0, %arg1, %c0_i32, %c0_i32_0 : i32, i32, i32, i32
  }
  func.func @transform_1(%arg0: i32, %arg1: i32) -> (i32, i32) {
    %c0_i32 = arith.constant 0 : i32
    %c0_i32_0 = arith.constant 0 : i32
    %c0_i32_1 = arith.constant 0 : i32
    return %c0_i32, %c0_i32_0 : i32, i32
  }
  func.func @transform_2(%arg0: i32, %arg1: i32) -> (i32, i32) {
    %c0_i32 = arith.constant 0 : i32
    %c0_i32_0 = arith.constant 0 : i32
    %c0_i32_1 = arith.constant 0 : i32
    return %c0_i32, %c0_i32_0 : i32, i32
  }
  func.func @transform_3(%arg0: i32, %arg1: i32) -> (i32, i32) {
    %c0_i32 = arith.constant 0 : i32
    %c0_i32_0 = arith.constant 0 : i32
    %c0_i32_1 = arith.constant 0 : i32
    return %c0_i32, %c0_i32_0 : i32, i32
  }
  func.func @transform_4(%arg0: i32, %arg1: i32) -> (i32, i32, i32) {
    %c0_i32 = arith.constant 0 : i32
    %c0_i32_0 = arith.constant 0 : i32
    return %arg0, %c0_i32, %arg1 : i32, i32, i32
  }
}

</mosaic_0001>

<llo_original>
// kernel: tpu_custom_call.1
$region0: #{tpu_custom_call.1}
  #allocation0 [shape = 'u32[]', space=smem, size = 0x4, offset = 0x4, fixed_abs, tag = 'smem constant byte address 0x4 - core index']
  #allocation1 [shape = 'u32[72,128]{1,0:T(1,128)}', space=vmem, size = 0x9000, scoped, tag = 'internal scratch']
  #allocation2 [shape = 'f32[32,256]{1,0:T(8,128)}', space=vmem, size = 0x8000, scoped, tag = 'scratch operand']
  %s0 = inlined_call_operand.hbm [shape: f32[2,1,4,290], index: 0, kind: input, shape index: {}]
  %s1 = inlined_call_operand.hbm [shape: bf16[8,32], index: 1, kind: input, shape index: {}]
  %s2 = inlined_call_operand.hbm [shape: f32[1,256], index: 2, kind: input, shape index: {}]
  %s3 = inlined_call_operand.hbm [shape: f32[2,256], index: 3, kind: input, shape index: {}]
  %s4 = inlined_call_operand.hbm [shape: f32[2,8,256], index: 4, kind: output, shape index: {}]
  %s5 = sld [smem:[#allocation0]]
  $region65: #{tpu_custom_call.1} parent=0
    _
  %s7 = ssub.s32 1, %s5
  %s8 = scalar_select 0, %s7, %s5
  $region1: #{tpu_custom_call.1} parent=0
    #allocation3 [shape = 'u8[12288]{0}', space=vmem, size = 0x3000, scoped, tag = 'input window, operand 0']
    #allocation4 [shape = 's32[2]{0}', space=sflag, size = 0x8, scoped, tag = 'scoped memory for tpu_custom_call.1']
    #allocation5 [shape = 's32[2]{0}', space=sflag, size = 0x8, scoped, tag = 'scoped memory for tpu_custom_call.1']
    #allocation6 [shape = 'u8[2048]{0}', space=vmem, size = 0x800, scoped, tag = 'input window, operand 1, single buffered']
    #allocation7 [shape = 's32[1]{0}', space=sflag, size = 0x4, scoped, tag = 'scoped memory for tpu_custom_call.1']
    #allocation8 [shape = 'u8[1024]{0}', space=vmem, size = 0x400, scoped, tag = 'input window, operand 2, single buffered']
    #allocation9 [shape = 'u8[2048]{0}', space=vmem, size = 0x800, scoped, tag = 'input window, operand 3, single buffered']
    #allocation10 [shape = 's32[1]{0}', space=sflag, size = 0x4, scoped, tag = 'scoped memory for tpu_custom_call.1']
    #allocation11 [shape = 'u8[16384]{0}', space=vmem, size = 0x4000, scoped, tag = 'output window, operand 0']
    %9 = vsyncpa [#allocation4], 0
    %s10 = scalar_lea.sflag [#allocation4], 1
    %11 = vsyncpa %s10, 0
    %12 = vsyncpa [#allocation7], 0
    %13 = vsyncpa [#allocation10], 0
    %14 = vsyncpa [#allocation5], 0
    %s15 = scalar_lea.sflag [#allocation5], 1
    %16 = vsyncpa %s15, 0
    loop: start=0, step=1, limit=4
    $region2: #{tpu_custom_call.1} parent=1 // loop_pre_header
      _
    $region3: #{tpu_custom_call.1} parent=1 // loop_header
      %s18 = sphi 0, %s22
      %p19 = scmp.ge.s32.totalorder %s18, 4
      %s25 = sphi 0, %s37
      %s26 = sphi 0, %s33
      %s27 = sphi 0, %s25
      %s28 = sphi 0, %s26
      %s29 = sphi 0, %s27
      %s30 = sphi 0, %s28
      %s42 = sphi 0, %s44
      %s45 = sphi 0, %s42
      %s46 = sphi 0, %s45
      %s62 = sphi 0, %s46
      %s66 = sphi 0, %s66
      %s68 = sphi 0, %s66
      %s69 = sphi 0, %s68
      %s83 = sphi 0, %s69
      %s87 = sphi 0, %s87
      %s89 = sphi 0, %s87
      %s90 = sphi 0, %s89
      %s104 = sphi 0, %s90
      %s108 = sphi 0, %s108
      %s110 = sphi 0, %s108
      %s111 = sphi 0, %s110
      %s125 = sphi 0, %s111
      %s133 = sphi 0, %s135
      %s136 = sphi 0, %s133
      %s137 = sphi 0, %s136
      %s153 = sphi 0, %s137
    $region4: #{tpu_custom_call.1} parent=1 // loop_header_branch
      %21 = sbr.rel (%p19) target = $region8
    $region5: #{tpu_custom_call.1} parent=1 // loop_body
      %s23 = ssub.s32 %s18, 1
      %s24 = ssub.s32 %s18, 2
      %s31 = sadd.s32 1, %s26
      %p32 = scmp.ge.s32.totalorder %s31, 1
      %s33 = scalar_select %p32, 0, %s31
      %s34 = sadd.s32 1, %s25
      %s35 = scalar_select %p32, %s34, %s25
      %p36 = scmp.ge.s32.totalorder %s35, 2
      %s37 = scalar_select %p36, 0, %s35
      %s38 = ssub.s32 %s25, %s37
      %s39 = ssub.s32 %s26, %s33
      %s40 = sor.u32 %s38, %s39
      %p41 = scmp.eq.s32.totalorder %s40, 0
      %s43 = sadd.s32 %s42, 1
      %s44 = scalar_select %p41, %s42, %s43
      %p47 = pneg %p41
      %p48 = scmp.eq.s32.totalorder %s18, 1
      %p49 = por %p47, %p48
      %p50 = scmp.ne.s32.totalorder %s42, %s45
      %p51 = scmp.eq.s32.totalorder %s18, 0
      %p52 = por %p50, %p51
      %p53 = scmp.ne.s32.totalorder %s42, %s45
      %p54 = scmp.eq.s32.totalorder %s23, 1
      %p55 = por %p53, %p54
      %p56 = scmp.ne.s32.totalorder %s45, %s46
      %p57 = scmp.eq.s32.totalorder %s23, 0
      %p58 = por %p56, %p57
      %p59 = scmp.ne.s32.totalorder %s45, %s46
      %p60 = scmp.eq.s32.totalorder %s24, 1
      %p61 = por %p59, %p60
      %p63 = scmp.ne.s32.totalorder %s46, %s62
      %p64 = scmp.eq.s32.totalorder %s24, 0
      %p65 = por %p63, %p64
      %s67 = sadd.s32 %s66, 1
      %p70 = scmp.eq.s32.totalorder %s18, 1
      %p71 = scmp.ne.s32.totalorder %s66, %s68
      %p72 = scmp.eq.s32.totalorder %s18, 0
      %p73 = por %p71, %p72
      %p74 = scmp.ne.s32.totalorder %s66, %s68
      %p75 = scmp.eq.s32.totalorder %s23, 1
      %p76 = por %p74, %p75
      %p77 = scmp.ne.s32.totalorder %s68, %s69
      %p78 = scmp.eq.s32.totalorder %s23, 0
      %p79 = por %p77, %p78
      %p80 = scmp.ne.s32.totalorder %s68, %s69
      %p81 = scmp.eq.s32.totalorder %s24, 1
      %p82 = por %p80, %p81
      %p84 = scmp.ne.s32.totalorder %s69, %s83
      %p85 = scmp.eq.s32.totalorder %s24, 0
      %p86 = por %p84, %p85
      %s88 = sadd.s32 %s87, 1
      %p91 = scmp.eq.s32.totalorder %s18, 1
      %p92 = scmp.ne.s32.totalorder %s87, %s89
      %p93 = scmp.eq.s32.totalorder %s18, 0
      %p94 = por %p92, %p93
      %p95 = scmp.ne.s32.totalorder %s87, %s89
      %p96 = scmp.eq.s32.totalorder %s23, 1
      %p97 = por %p95, %p96
      %p98 = scmp.ne.s32.totalorder %s89, %s90
      %p99 = scmp.eq.s32.totalorder %s23, 0
      %p100 = por %p98, %p99
      %p101 = scmp.ne.s32.totalorder %s89, %s90
      %p102 = scmp.eq.s32.totalorder %s24, 1
      %p103 = por %p101, %p102
      %p105 = scmp.ne.s32.totalorder %s90, %s104
      %p106 = scmp.eq.s32.totalorder %s24, 0
      %p107 = por %p105, %p106
      %s109 = sadd.s32 %s108, 1
      %p112 = scmp.eq.s32.totalorder %s18, 1
      %p113 = scmp.ne.s32.totalorder %s108, %s110
      %p114 = scmp.eq.s32.totalorder %s18, 0
      %p115 = por %p113, %p114
      %p116 = scmp.ne.s32.totalorder %s108, %s110
      %p117 = scmp.eq.s32.totalorder %s23, 1
      %p118 = por %p116, %p117
      %p119 = scmp.ne.s32.totalorder %s110, %s111
      %p120 = scmp.eq.s32.totalorder %s23, 0
      %p121 = por %p119, %p120
      %p122 = scmp.ne.s32.totalorder %s110, %s111
      %p123 = scmp.eq.s32.totalorder %s24, 1
      %p124 = por %p122, %p123
      %p126 = scmp.ne.s32.totalorder %s111, %s125
      %p127 = scmp.eq.s32.totalorder %s24, 0
      %p128 = por %p126, %p127
      %s129 = ssub.s32 %s25, %s37
      %s130 = ssub.s32 %s26, %s33
      %s131 = sor.u32 %s129, %s130
      %p132 = scmp.eq.s32.totalorder %s131, 0
      %s134 = sadd.s32 %s133, 1
      %s135 = scalar_select %p132, %s133, %s134
      %p138 = pneg %p132
      %p139 = scmp.eq.s32.totalorder %s18, 1
      %p140 = por %p138, %p139
      %p141 = scmp.ne.s32.totalorder %s133, %s136
      %p142 = scmp.eq.s32.totalorder %s18, 0
      %p143 = por %p141, %p142
      %p144 = scmp.ne.s32.totalorder %s133, %s136
      %p145 = scmp.eq.s32.totalorder %s23, 1
      %p146 = por %p144, %p145
      %p147 = scmp.ne.s32.totalorder %s136, %s137
      %p148 = scmp.eq.s32.totalorder %s23, 0
      %p149 = por %p147, %p148
      %p150 = scmp.ne.s32.totalorder %s136, %s137
      %p151 = scmp.eq.s32.totalorder %s24, 1
      %p152 = por %p150, %p151
      %p154 = scmp.ne.s32.totalorder %s137, %s153
      %p155 = scmp.eq.s32.totalorder %s24, 0
      %p156 = por %p154, %p155
      %p157 = scmp.le.s32.totalorder 1, %s18
      %p158 = scmp.lt.s32.totalorder %s18, 3
      %p159 = pnand %p157, %p158
      %p160 = pneg %p159
      // Predicated region
      $region9: #{tpu_custom_call.1} parent=5 // pred_check
        _
      $region10: #{tpu_custom_call.1} parent=5 // pred_check_branch
        %162 = sbr.rel (%p159) target = $region12
      $region11: #{tpu_custom_call.1} parent=5 // pred_region
        %s163 = ssub.s32 %s18, 1
        // Predicated region
        $region13: #{tpu_custom_call.1} parent=11 // pred_check
          %p164 = pneg %p79
        $region14: #{tpu_custom_call.1} parent=11 // pred_check_branch
          %166 = sbr.rel (%p164) target = $region16
        $region15: #{tpu_custom_call.1} parent=11 // pred_region
          %168 = vsyncadd [#allocation7], 0
          %s170 = sshll.u32 %s1, 4
          %s171 = int_to_ptr.hbm [resolvable:$true] %s170
          %s172 = sshll.u32 [#allocation6], 4
          %s173 = int_to_ptr.vmem [resolvable:$true] %s172
          %175 = dma.hbm_to_vmem [thread:$0]  %s171, 64, %s173, [#allocation7]
        $region16: #{tpu_custom_call.1} parent=11 // pred_fallthru
          _
        // Predicated region
        $region17: #{tpu_custom_call.1} parent=11 // pred_check
          %p176 = pneg %p100
        $region18: #{tpu_custom_call.1} parent=11 // pred_check_branch
          %178 = sbr.rel (%p176) target = $region20
        $region19: #{tpu_custom_call.1} parent=11 // pred_region
          %180 = vsyncadd [#allocation7], 0
          %s182 = sshll.u32 %s2, 4
          %s183 = int_to_ptr.hbm [resolvable:$true] %s182
          %s184 = sshll.u32 [#allocation8], 4
          %s185 = int_to_ptr.vmem [resolvable:$true] %s184
          %187 = dma.hbm_to_vmem [thread:$0]  %s183, 32, %s185, [#allocation7]
        $region20: #{tpu_custom_call.1} parent=11 // pred_fallthru
          _
        // Predicated region
        $region21: #{tpu_custom_call.1} parent=11 // pred_check
          %p188 = pneg %p121
        $region22: #{tpu_custom_call.1} parent=11 // pred_check_branch
          %190 = sbr.rel (%p188) target = $region24
        $region23: #{tpu_custom_call.1} parent=11 // pred_region
          %192 = vsyncadd [#allocation10], 0
          %s194 = sshll.u32 %s3, 4
          %s195 = int_to_ptr.hbm [resolvable:$true] %s194
          %s196 = sshll.u32 [#allocation9], 4
          %s197 = int_to_ptr.vmem [resolvable:$true] %s196
          %199 = dma.hbm_to_vmem [thread:$0]  %s195, 64, %s197, [#allocation10]
        $region24: #{tpu_custom_call.1} parent=11 // pred_fallthru
          _
      $region12: #{tpu_custom_call.1} parent=5 // pred_fallthru
        _
      %p200 = scmp.lt.s32.totalorder %s18, 2
      // Predicated region
      $region25: #{tpu_custom_call.1} parent=5 // pred_check
        %p201 = pneg %p200
      $region26: #{tpu_custom_call.1} parent=5 // pred_check_branch
        %203 = sbr.rel (%p201) target = $region28
      $region27: #{tpu_custom_call.1} parent=5 // pred_region
        // Predicated region
        $region29: #{tpu_custom_call.1} parent=27 // pred_check
          %p204 = pneg %p52
        $region30: #{tpu_custom_call.1} parent=27 // pred_check_branch
          %206 = sbr.rel (%p204) target = $region32
        $region31: #{tpu_custom_call.1} parent=27 // pred_region
          %s207 = sand.u32 %s42, 1
          %s208 = scalar_lea.sflag [#allocation4], %s207
          %s209 = sand.u32 %s42, 1
          %s210 = smul.addr %s209, 12
          %s211 = scalar_lea.vmem [#allocation3], %s210
          %213 = vsyncadd %s208, 0
          %s214 = smul.addr %s26, 3
          %s215 = smul.addr %s25, 3
          %s216 = sadd.s32 %s214, %s215
          %s217 = smul.addr %s216, 4
          %s218 = scalar_lea.hbm %s0, %s217
          %s220 = sshll.u32 %s218, 4
          %s221 = int_to_ptr.hbm [resolvable:$true] %s220
          %s222 = sshll.u32 %s211, 4
          %s223 = int_to_ptr.vmem [resolvable:$true] %s222
          %225 = dma.hbm_to_vmem [thread:$0]  %s221, 192, %s223, %s208
        $region32: #{tpu_custom_call.1} parent=27 // pred_fallthru
          _
      $region28: #{tpu_custom_call.1} parent=5 // pred_fallthru
        _
      %p226 = scmp.le.s32.totalorder 1, %s18
      %p227 = scmp.lt.s32.totalorder %s18, 3
      %p228 = pnand %p226, %p227
      %p229 = pneg %p228
      // Predicated region
      $region33: #{tpu_custom_call.1} parent=5 // pred_check
        _
      $region34: #{tpu_custom_call.1} parent=5 // pred_check_branch
        %231 = sbr.rel (%p228) target = $region36
      $region35: #{tpu_custom_call.1} parent=5 // pred_region
        %s232 = ssub.s32 %s18, 1
        %s233 = sand.u32 %s45, 1
        %s234 = scalar_lea.sflag [#allocation4], %s233
        %s235 = sand.u32 %s45, 1
        %s236 = smul.addr %s235, 12
        %s237 = scalar_lea.vmem [#allocation3], %s236
        // Predicated region
        $region37: #{tpu_custom_call.1} parent=35 // pred_check
          %p238 = pneg %p58
        $region38: #{tpu_custom_call.1} parent=35 // pred_check_branch
          %240 = sbr.rel (%p238) target = $region40
        $region39: #{tpu_custom_call.1} parent=35 // pred_region
          %242 = dma.done %s234, 192
        $region40: #{tpu_custom_call.1} parent=35 // pred_fallthru
          _
        // Predicated region
        $region41: #{tpu_custom_call.1} parent=35 // pred_check
          %p243 = pneg %p79
        $region42: #{tpu_custom_call.1} parent=35 // pred_check_branch
          %245 = sbr.rel (%p243) target = $region44
        $region43: #{tpu_custom_call.1} parent=35 // pred_region
          %247 = dma.done [#allocation7], 64
        $region44: #{tpu_custom_call.1} parent=35 // pred_fallthru
          _
        // Predicated region
        $region45: #{tpu_custom_call.1} parent=35 // pred_check
          %p248 = pneg %p100
        $region46: #{tpu_custom_call.1} parent=35 // pred_check_branch
          %250 = sbr.rel (%p248) target = $region48
        $region47: #{tpu_custom_call.1} parent=35 // pred_region
          %252 = dma.done [#allocation7], 32
        $region48: #{tpu_custom_call.1} parent=35 // pred_fallthru
          _
        // Predicated region
        $region49: #{tpu_custom_call.1} parent=35 // pred_check
          %p253 = pneg %p121
        $region50: #{tpu_custom_call.1} parent=35 // pred_check_branch
          %255 = sbr.rel (%p253) target = $region52
        $region51: #{tpu_custom_call.1} parent=35 // pred_region
          %257 = dma.done [#allocation10], 64
        $region52: #{tpu_custom_call.1} parent=35 // pred_fallthru
          _
        %s258 = sand.u32 %s45, 1
        %s259 = scalar_lea.sflag [#allocation4], %s258
        %s260 = sand.u32 %s45, 1
        %s261 = smul.addr %s260, 12
        %s262 = scalar_lea.vmem [#allocation3], %s261
        %p263 = pneg %p58
        %p264 = pneg %p55
        %p265 = pneg %p79
        %p266 = pneg %p76
        %p267 = pneg %p100
        %p268 = pneg %p97
        %p269 = pneg %p121
        %p270 = pneg %p118
        %p271 = pneg %p149
        %p272 = pneg %p146
        %s273 = sand.u32 %s136, 1
        %s274 = scalar_lea.sflag [#allocation5], %s273
        %s275 = sand.u32 %s136, 1
        %s276 = smul.addr %s275, 16
        %s277 = scalar_lea.vmem [#allocation11], %s276
        %s278 = smul.u32 2, %s28
        %v280 = vld [vmem:[%s237] sm:$0xff]
        %v281 = vld [vmem:[%s237 + $0x8] sm:$0xf]
        %v282 = vld [vmem:[#allocation8] sm:$0x3]
        %v284 = vperm.slane %v282, 0
        %v285 = vperm.slane %v282, 1
        %290 = vst [vmem:[#allocation1] ss:$2 sm:$0xff] %v280
        %s291 = scalar_lea.vmem [#allocation1], 16
        %292 = vst [vmem:[%s291] ss:$2 sm:$0xff] %v281
        %v293 = vld.sshfl [vmem:[#allocation1] sm:$0xff pattern:$0x75316420]
        %v294 = vld.sshfl [vmem:[#allocation1 + $0x8] sm:$0xff pattern:$0x75316420]
        %v295 = vld.sshfl [vmem:[#allocation1 + $0x10] sm:$0xff pattern:$0x75316420]
        %296 = vrot.lane.b32.xlu0 %v293, 111
        %v297 = vpop.permute.xlu0 %296
        %298 = vrot.lane.b32.xlu0 %v294, 111
        %v299 = vpop.permute.xlu0 %298
        %300 = vrot.lane.b32.xlu0 %v295, 111
        %v301 = vpop.permute.xlu0 %300
        %vm302 = vcmask 908288
        %v303 = vsel %vm302, %v297, %v299
        %v304 = vsel %vm302, %v299, %v301
        %v307 = vsub.f32 %v284, %v303
        %v308 = vsub.f32 %v285, %v304
        %v309 = vld [vmem:[#allocation9] ss:$2 sm:$0x3]
        %v311 = vperm.slane %v309, 0
        %v312 = vperm.slane %v309, 1
        %s313 = scalar_lea.vmem [#allocation9], 1
        %v314 = vld [vmem:[%s313] ss:$2 sm:$0x3]
        %v316 = vperm.slane %v314, 0
        %v317 = vperm.slane %v314, 1
        %v318 = vld [vmem:[%s237] sm:$0xff]
        %v319 = vrot.slane %v312, 4
        %vm320 = vcmask 1043456
        %v321 = vsel %vm320, %v311, %v319
        %v323 = vmul.f32 %v318, %v321
        %v326 = vrot.slane %v308, 4
        %v327 = vsel %vm320, %v307, %v326
        %v329 = vadd.f32 %v323, %v327
        %vm330 = vcmp.gt.f32.partialorder %v329, 0.0
        %v331 = vsel %vm330, 1.0, -1.0
        %333 = vst [vmem:[#allocation1] ss:$2 sm:$0xff] %v331
        %v334 = vld.sshfl [vmem:[#allocation1] sm:$0xff pattern:$0x75316420]
        %v335 = vld.sshfl [vmem:[#allocation1 + $0x8] sm:$0xff pattern:$0x75316420]
        %338 = vst [vmem:[#allocation2] sm:$0xf] %v334
        %339 = vst [vmem:[#allocation2 + $0x8] sm:$0xf] %v335
        %v340 = vld [vmem:[%s237] sm:$0xff]
        %v341 = vld [vmem:[%s237 + $0x8] sm:$0xf]
        %342 = vrot.lane.b32.xlu0 %v327, 1
        %v343 = vpop.permute.xlu0 %342
        %v344 = vrot.slane %v343, 4
        %vm345 = vcmask 7168
        %v346 = vsel %vm345, %v344, %v343
        %v349 = vadd.f32 %v340, %v346
        %v350 = vadd.f32 %v341, %v344
        %vm351 = vcmp.gt.f32.partialorder %v349, 0.0
        %vm352 = vcmp.gt.f32.partialorder %v350, 0.0
        %v353 = vsel %vm351, 1.0, -1.0
        %v354 = vsel %vm352, 1.0, -1.0
        %s357 = scalar_lea.vmem [#allocation1], 1
        %358 = vst [vmem:[%s357] ss:$2 sm:$0xff] %v353
        %s359 = scalar_lea.vmem [#allocation1], 17
        %360 = vst [vmem:[%s359] ss:$2 sm:$0xff] %v354
        %v361 = vld.sshfl [vmem:[#allocation1] sm:$0xff pattern:$0x75316420]
        %v362 = vld.sshfl [vmem:[#allocation1 + $0x8] sm:$0xff pattern:$0x75316420]
        %v363 = vld.sshfl [vmem:[#allocation1 + $0x10] sm:$0xff pattern:$0x75316420]
        %364 = vrot.lane.b32.xlu0 %v361, 127
        %v365 = vpop.permute.xlu0 %364
        %366 = vrot.lane.b32.xlu0 %v362, 127
        %v367 = vpop.permute.xlu0 %366
        %368 = vrot.lane.b32.xlu0 %v363, 127
        %v369 = vpop.permute.xlu0 %368
        %vm370 = vcmask 1039360
        %v371 = vsel %vm370, %v365, %v367
        %v372 = vsel %vm370, %v367, %v369
        %375 = vst [vmem:[#allocation2] sm:$0xf0] %v371
        %376 = vst [vmem:[#allocation2 + $0x8] sm:$0xf0] %v372
        %v377 = vld [vmem:[%s237] sm:$0xff]
        %v378 = vld [vmem:[%s237 + $0x8] sm:$0xf]
        %v379 = vrot.slane %v317, 4
        %v380 = vsel %vm320, %v316, %v379
        %381 = vrot.lane.b32.xlu0 %v380, 2
        %v382 = vpop.permute.xlu0 %381
        %v383 = vrot.slane %v382, 4
        %vm384 = vcmask 15360
        %v385 = vsel %vm384, %v383, %v382
        %v388 = vmul.f32 %v377, %v385
        %v389 = vmul.f32 %v378, %v383
        %390 = vrot.lane.b32.xlu0 %v327, 2
        %v391 = vpop.permute.xlu0 %390
        %v392 = vrot.slane %v391, 4
        %v393 = vsel %vm384, %v392, %v391
        %v396 = vadd.f32 %v388, %v393
        %v397 = vadd.f32 %v389, %v392
        %vm398 = vcmp.gt.f32.partialorder %v396, 0.0
        %vm399 = vcmp.gt.f32.partialorder %v397, 0.0
        %v400 = vsel %vm398, 1.0, -1.0
        %v401 = vsel %vm399, 1.0, -1.0
        %404 = vst [vmem:[#allocation1] ss:$2 sm:$0xff] %v400
        %s405 = scalar_lea.vmem [#allocation1], 16
        %406 = vst [vmem:[%s405] ss:$2 sm:$0xff] %v401
        %v407 = vld.sshfl [vmem:[#allocation1] sm:$0xff pattern:$0x75316420]
        %v408 = vld.sshfl [vmem:[#allocation1 + $0x8] sm:$0xff pattern:$0x75316420]
        %v409 = vld.sshfl [vmem:[#allocation1 + $0x10] sm:$0xff pattern:$0x75316420]
        %410 = vrot.lane.b32.xlu0 %v407, 126
        %v411 = vpop.permute.xlu0 %410
        %412 = vrot.lane.b32.xlu0 %v408, 126
        %v413 = vpop.permute.xlu0 %412
        %414 = vrot.lane.b32.xlu0 %v409, 126
        %v415 = vpop.permute.xlu0 %414
        %vm416 = vcmask 1031168
        %v417 = vsel %vm416, %v411, %v413
        %v418 = vsel %vm416, %v413, %v415
        %421 = vst [vmem:[#allocation2 + $0x10] sm:$0xf] %v417
        %422 = vst [vmem:[#allocation2 + $0x18] sm:$0xf] %v418
        %v423 = vld [vmem:[%s237] sm:$0xff]
        %v424 = vld [vmem:[%s237 + $0x8] sm:$0xf]
        %425 = vrot.lane.b32.xlu0 %v321, 16
        %v426 = vpop.permute.xlu0 %425
        %v427 = vrot.slane %v426, 4
        %vm428 = vcmask 130048
        %v429 = vsel %vm428, %v427, %v426
        %v432 = vmul.f32 %v423, %v429
        %v433 = vmul.f32 %v424, %v427
        %434 = vrot.lane.b32.xlu0 %v327, 16
        %v435 = vpop.permute.xlu0 %434
        %v436 = vrot.slane %v435, 4
        %v437 = vsel %vm428, %v436, %v435
        %v440 = vadd.f32 %v432, %v437
        %v441 = vadd.f32 %v433, %v436
        %vm442 = vcmp.gt.f32.partialorder %v440, 0.0
        %vm443 = vcmp.gt.f32.partialorder %v441, 0.0
        %v444 = vsel %vm442, 1.0, -1.0
        %v445 = vsel %vm443, 1.0, -1.0
        %s448 = scalar_lea.vmem [#allocation1], 1
        %449 = vst [vmem:[%s448] ss:$2 sm:$0xff] %v444
        %s450 = scalar_lea.vmem [#allocation1], 17
        %451 = vst [vmem:[%s450] ss:$2 sm:$0xff] %v445
        %v452 = vld.sshfl [vmem:[#allocation1] sm:$0xff pattern:$0x75316420]
        %v453 = vld.sshfl [vmem:[#allocation1 + $0x8] sm:$0xff pattern:$0x75316420]
        %v454 = vld.sshfl [vmem:[#allocation1 + $0x10] sm:$0xff pattern:$0x75316420]
        %455 = vrot.lane.b32.xlu0 %v452, 112
        %v456 = vpop.permute.xlu0 %455
        %457 = vrot.lane.b32.xlu0 %v453, 112
        %v458 = vpop.permute.xlu0 %457
        %459 = vrot.lane.b32.xlu0 %v454, 112
        %v460 = vpop.permute.xlu0 %459
        %vm461 = vcmask 916480
        %v462 = vsel %vm461, %v456, %v458
        %v463 = vsel %vm461, %v458, %v460
        %466 = vst [vmem:[#allocation2 + $0x10] sm:$0xf0] %v462
        %467 = vst [vmem:[#allocation2 + $0x18] sm:$0xf0] %v463
        %v468 = vld [vmem:[%s237] sm:$0xff]
        %v469 = vld [vmem:[%s237 + $0x8] sm:$0xf]
        %470 = vrot.lane.b32.xlu0 %v380, 18
        %v471 = vpop.permute.xlu0 %470
        %v472 = vrot.slane %v471, 4
        %vm473 = vcmask 146432
        %v474 = vsel %vm473, %v472, %v471
        %v477 = vmul.f32 %v468, %v474
        %v478 = vmul.f32 %v469, %v472
        %479 = vrot.lane.b32.xlu0 %v327, 18
        %v480 = vpop.permute.xlu0 %479
        %v481 = vrot.slane %v480, 4
        %v482 = vsel %vm473, %v481, %v480
        %v485 = vadd.f32 %v477, %v482
        %v486 = vadd.f32 %v478, %v481
        %vm487 = vcmp.gt.f32.partialorder %v485, 0.0
        %vm488 = vcmp.gt.f32.partialorder %v486, 0.0
        %v489 = vsel %vm487, 1.0, -1.0
        %v490 = vsel %vm488, 1.0, -1.0
        %493 = vst [vmem:[#allocation1] ss:$2 sm:$0xff] %v489
        %s494 = scalar_lea.vmem [#allocation1], 16
        %495 = vst [vmem:[%s494] ss:$2 sm:$0xff] %v490
        %v496 = vld.sshfl [vmem:[#allocation1] sm:$0xff pattern:$0x75316420]
        %v497 = vld.sshfl [vmem:[#allocation1 + $0x8] sm:$0xff pattern:$0x75316420]
        %v498 = vld.sshfl [vmem:[#allocation1 + $0x10] sm:$0xff pattern:$0x75316420]
        %499 = vrot.lane.b32.xlu0 %v496, 110
        %v500 = vpop.permute.xlu0 %499
        %501 = vrot.lane.b32.xlu0 %v497, 110
        %v502 = vpop.permute.xlu0 %501
        %503 = vrot.lane.b32.xlu0 %v498, 110
        %v504 = vpop.permute.xlu0 %503
        %vm505 = vcmask 900096
        %v506 = vsel %vm505, %v500, %v502
        %v507 = vsel %vm505, %v502, %v504
        %510 = vst [vmem:[#allocation2 + $0x20] sm:$0xf] %v506
        %511 = vst [vmem:[#allocation2 + $0x28] sm:$0xf] %v507
        %v512 = vld [vmem:[%s237] sm:$0xff]
        %v513 = vld [vmem:[%s237 + $0x8] sm:$0xf]
        %514 = vrot.lane.b32.xlu0 %v321, 32
        %v515 = vpop.permute.xlu0 %514
        %v516 = vrot.slane %v515, 4
        %vm517 = vcmask 261120
        %v518 = vsel %vm517, %v516, %v515
        %v521 = vmul.f32 %v512, %v518
        %v522 = vmul.f32 %v513, %v516
        %523 = vrot.lane.b32.xlu0 %v327, 32
        %v524 = vpop.permute.xlu0 %523
        %v525 = vrot.slane %v524, 4
        %v526 = vsel %vm517, %v525, %v524
        %v529 = vadd.f32 %v521, %v526
        %v530 = vadd.f32 %v522, %v525
        %vm531 = vcmp.gt.f32.partialorder %v529, 0.0
        %vm532 = vcmp.gt.f32.partialorder %v530, 0.0
        %v533 = vsel %vm531, 1.0, -1.0
        %v534 = vsel %vm532, 1.0, -1.0
        %s537 = scalar_lea.vmem [#allocation1], 1
        %538 = vst [vmem:[%s537] ss:$2 sm:$0xff] %v533
        %s539 = scalar_lea.vmem [#allocation1], 17
        %540 = vst [vmem:[%s539] ss:$2 sm:$0xff] %v534
        %v541 = vld.sshfl [vmem:[#allocation1] sm:$0xff pattern:$0x75316420]
        %v542 = vld.sshfl [vmem:[#allocation1 + $0x8] sm:$0xff pattern:$0x75316420]
        %v543 = vld.sshfl [vmem:[#allocation1 + $0x10] sm:$0xff pattern:$0x75316420]
        %544 = vrot.lane.b32.xlu0 %v541, 96
        %v545 = vpop.permute.xlu0 %544
        %546 = vrot.lane.b32.xlu0 %v542, 96
        %v547 = vpop.permute.xlu0 %546
        %548 = vrot.lane.b32.xlu0 %v543, 96
        %v549 = vpop.permute.xlu0 %548
        %vm550 = vcmask 785408
        %v551 = vsel %vm550, %v545, %v547
        %v552 = vsel %vm550, %v547, %v549
        %555 = vst [vmem:[#allocation2 + $0x20] sm:$0xf0] %v551
        %556 = vst [vmem:[#allocation2 + $0x28] sm:$0xf0] %v552
        %v557 = vld [vmem:[%s237] sm:$0xff]
        %v558 = vld [vmem:[%s237 + $0x8] sm:$0xf]
        %559 = vrot.lane.b32.xlu0 %v327, 33
        %v560 = vpop.permute.xlu0 %559
        %v561 = vrot.slane %v560, 4
        %vm562 = vcmask 269312
        %v563 = vsel %vm562, %v561, %v560
        %v566 = vadd.f32 %v557, %v563
        %v567 = vadd.f32 %v558, %v561
        %vm568 = vcmp.gt.f32.partialorder %v566, 0.0
        %vm569 = vcmp.gt.f32.partialorder %v567, 0.0
        %v570 = vsel %vm568, 1.0, -1.0
        %v571 = vsel %vm569, 1.0, -1.0
        %574 = vst [vmem:[#allocation1] ss:$2 sm:$0xff] %v570
        %s575 = scalar_lea.vmem [#allocation1], 16
        %576 = vst [vmem:[%s575] ss:$2 sm:$0xff] %v571
        %v577 = vld.sshfl [vmem:[#allocation1] sm:$0xff pattern:$0x75316420]
        %v578 = vld.sshfl [vmem:[#allocation1 + $0x8] sm:$0xff pattern:$0x75316420]
        %v579 = vld.sshfl [vmem:[#allocation1 + $0x10] sm:$0xff pattern:$0x75316420]
        %580 = vrot.lane.b32.xlu0 %v577, 95
        %v581 = vpop.permute.xlu0 %580
        %582 = vrot.lane.b32.xlu0 %v578, 95
        %v583 = vpop.permute.xlu0 %582
        %584 = vrot.lane.b32.xlu0 %v579, 95
        %v585 = vpop.permute.xlu0 %584
        %vm586 = vcmask 777216
        %v587 = vsel %vm586, %v581, %v583
        %v588 = vsel %vm586, %v583, %v585
        %591 = vst [vmem:[#allocation2 + $0x30] sm:$0xf] %v587
        %592 = vst [vmem:[#allocation2 + $0x38] sm:$0xf] %v588
        %v593 = vld [vmem:[%s237] sm:$0xff]
        %v594 = vld [vmem:[%s237 + $0x8] sm:$0xf]
        %595 = vrot.lane.b32.xlu0 %v380, 34
        %v596 = vpop.permute.xlu0 %595
        %v597 = vrot.slane %v596, 4
        %vm598 = vcmask 277504
        %v599 = vsel %vm598, %v597, %v596
        %v602 = vmul.f32 %v593, %v599
        %v603 = vmul.f32 %v594, %v597
        %604 = vrot.lane.b32.xlu0 %v327, 34
        %v605 = vpop.permute.xlu0 %604
        %v606 = vrot.slane %v605, 4
        %v607 = vsel %vm598, %v606, %v605
        %v610 = vadd.f32 %v602, %v607
        %v611 = vadd.f32 %v603, %v606
        %vm612 = vcmp.gt.f32.partialorder %v610, 0.0
        %vm613 = vcmp.gt.f32.partialorder %v611, 0.0
        %v614 = vsel %vm612, 1.0, -1.0
        %v615 = vsel %vm613, 1.0, -1.0
        %s618 = scalar_lea.vmem [#allocation1], 1
        %619 = vst [vmem:[%s618] ss:$2 sm:$0xff] %v614
        %s620 = scalar_lea.vmem [#allocation1], 17
        %621 = vst [vmem:[%s620] ss:$2 sm:$0xff] %v615
        %v622 = vld.sshfl [vmem:[#allocation1] sm:$0xff pattern:$0x75316420]
        %v623 = vld.sshfl [vmem:[#allocation1 + $0x8] sm:$0xff pattern:$0x75316420]
        %v624 = vld.sshfl [vmem:[#allocation1 + $0x10] sm:$0xff pattern:$0x75316420]
        %625 = vrot.lane.b32.xlu0 %v622, 94
        %v626 = vpop.permute.xlu0 %625
        %627 = vrot.lane.b32.xlu0 %v623, 94
        %v628 = vpop.permute.xlu0 %627
        %629 = vrot.lane.b32.xlu0 %v624, 94
        %v630 = vpop.permute.xlu0 %629
        %vm631 = vcmask 769024
        %v632 = vsel %vm631, %v626, %v628
        %v633 = vsel %vm631, %v628, %v630
        %636 = vst [vmem:[#allocation2 + $0x30] sm:$0xf0] %v632
        %637 = vst [vmem:[#allocation2 + $0x38] sm:$0xf0] %v633
        %v638 = vld [vmem:[#allocation6] sm:$0xf]
        %v639 = vld [vmem:[#allocation2] sm:$0xff]
        %v640 = vld [vmem:[#allocation2 + $0x8] sm:$0xff]
        %v641 = vld [vmem:[#allocation2 + $0x10] sm:$0xff]
        %v642 = vld [vmem:[#allocation2 + $0x18] sm:$0xff]
        %v643 = vld [vmem:[#allocation2 + $0x20] sm:$0xff]
        %v644 = vld [vmem:[#allocation2 + $0x28] sm:$0xff]
        %v645 = vld [vmem:[#allocation2 + $0x30] sm:$0xff]
        %v646 = vld [vmem:[#allocation2 + $0x38] sm:$0xff]
        %v647 = vpack.c.bf16 %v641, %v639
        %v648 = vpack.c.bf16 %v642, %v640
        %v649 = vpack.c.bf16 %v645, %v643
        %v650 = vpack.c.bf16 %v646, %v644
        %v652 = vsel %vm517, %v638, 0
        %654 = vmatpush.bf16.msra.mxu0 0
        %655 = vmatpush.bf16.msra.mxu0 0
        %656 = vmatpush.bf16.msra.mxu0 0
        %657 = vmatpush.bf16.msra.mxu0 0
        %658 = vmatpush.bf16.msra.mxu0 0
        %659 = vmatpush.bf16.msra.mxu0 0
        %660 = vmatpush.bf16.msra.mxu0 %v649
        %661 = vmatpush.bf16.msra.mxu0 %v647
        %662 = vmatmul.bf16.gmra.mxu0 %v652
        %v663 = vpop.f32.mrf.mxu0
        %v664 = vadd.f32 0.0, %v663
        %v665 = vpop.f32.mrf.mxu0
        %666 = vdwg.mxu0
        %667 = vmatpush.bf16.msra.mxu0 0
        %668 = vmatpush.bf16.msra.mxu0 0
        %669 = vmatpush.bf16.msra.mxu0 0
        %670 = vmatpush.bf16.msra.mxu0 0
        %671 = vmatpush.bf16.msra.mxu0 0
        %672 = vmatpush.bf16.msra.mxu0 0
        %673 = vmatpush.bf16.msra.mxu0 %v650
        %674 = vmatpush.bf16.msra.mxu0 %v648
        %675 = vmatmul.bf16.gmra.mxu0 %v652
        %v676 = vpop.f32.mrf.mxu0
        %v677 = vadd.f32 0.0, %v676
        %v678 = vpop.f32.mrf.mxu0
        %679 = vdwg.mxu0
        %680 = vst [vmem:[%s277] sm:$0xff] %v664
        %681 = vst [vmem:[%s277 + $0x8] sm:$0xff] %v677
        %s682 = sand.u32 %s136, 1
        %s683 = scalar_lea.sflag [#allocation5], %s682
        %s684 = sand.u32 %s136, 1
        %s685 = smul.addr %s684, 16
        %s686 = scalar_lea.vmem [#allocation11], %s685
        // Predicated region
        $region53: #{tpu_custom_call.1} parent=35 // pred_check
          %p687 = pneg %p146
        $region54: #{tpu_custom_call.1} parent=35 // pred_check_branch
          %689 = sbr.rel (%p687) target = $region56
        $region55: #{tpu_custom_call.1} parent=35 // pred_region
          %s690 = smul.u32 2, %s28
          %692 = vsyncadd %s683, 0
          %s693 = smul.addr %s27, 2
          %s694 = sadd.s32 %s690, %s693
          %s695 = smul.addr %s694, 8
          %s696 = scalar_lea.hbm %s4, %s695
          %s698 = sshll.u32 %s686, 4
          %s699 = int_to_ptr.vmem [resolvable:$true] %s698
          %s700 = sshll.u32 %s696, 4
          %s701 = int_to_ptr.hbm [resolvable:$true] %s700
          %703 = dma.vmem_to_hbm [thread:$0]  %s699, 256, %s701, %s683
        $region56: #{tpu_custom_call.1} parent=35 // pred_fallthru
          _
      $region36: #{tpu_custom_call.1} parent=5 // pred_fallthru
        _
      %p704 = scmp.le.s32.totalorder 2, %s18
      // Predicated region
      $region57: #{tpu_custom_call.1} parent=5 // pred_check
        %p705 = pneg %p704
      $region58: #{tpu_custom_call.1} parent=5 // pred_check_branch
        %707 = sbr.rel (%p705) target = $region60
      $region59: #{tpu_custom_call.1} parent=5 // pred_region
        %s708 = ssub.s32 %s18, 2
        // Predicated region
        $region61: #{tpu_custom_call.1} parent=59 // pred_check
          %p709 = pneg %p152
        $region62: #{tpu_custom_call.1} parent=59 // pred_check_branch
          %711 = sbr.rel (%p709) target = $region64
        $region63: #{tpu_custom_call.1} parent=59 // pred_region
          %s712 = sand.u32 %s137, 1
          %s713 = scalar_lea.sflag [#allocation5], %s712
          %s714 = sand.u32 %s137, 1
          %s715 = smul.addr %s714, 16
          %s716 = scalar_lea.vmem [#allocation11], %s715
          %718 = dma.done %s713, 256
        $region64: #{tpu_custom_call.1} parent=59 // pred_fallthru
          _
      $region60: #{tpu_custom_call.1} parent=5 // pred_fallthru
        _
    $region6: #{tpu_custom_call.1} parent=1 // loop_footer
      %s22 = sadd.s32 1, %s18
    $region7: #{tpu_custom_call.1} parent=1 // loop_footer_branch
      %17 = sbr.rel target = $region3
    $region8: #{tpu_custom_call.1} parent=1 // loop_exit
      _
    %719 = vsyncpa [#allocation4], 1
    %s720 = scalar_lea.sflag [#allocation4], 1
    %721 = vsyncpa %s720, 1
    %722 = vsyncpa [#allocation7], 1
    %723 = vsyncpa [#allocation10], 1
    %724 = vsyncpa [#allocation5], 1
    %s725 = scalar_lea.sflag [#allocation5], 1
    %726 = vsyncpa %s725, 1

</llo_original>
